<compile_context>
chip_gen: v7x
topology: tpu7x:2x2x1
jax: 0.10.0
libtpu: 0.0.40
codegen_flags: <defaults>
</compile_context>

<pallas_src>
import jax
import jax.numpy as jnp
from jax.experimental import pallas as pl
from jax.experimental.pallas import tpu as pltpu


_TK_CAP = 2048     # single full-extent K tile up to this Z (no Z padding)
_TB_CAP = 1024     # cover the whole batch in one tile up to this size


def _round_up(x, m):
    return ((x + m - 1) // m) * m


def _cdiv(a, b):
    return -(-a // b)


def _vmem_capacity_bytes():
    """Physical VMEM per TensorCore; conservative 64 MiB (v7x) fallback."""
    try:
        info = pltpu.get_tpu_info()
        for name in ("vmem_capacity_bytes", "vmem_bytes", "vmem_size_bytes"):
            v = getattr(info, name, None)
            if v:
                return int(v)
    except Exception:
        pass
    return 64 * 1024 * 1024


def _plan_reduction(z_dim):
    """Returns (tk, Zp): reduction tile and (possibly padded) reduction extent."""
    if z_dim <= _TK_CAP:
        return z_dim, z_dim            # full-extent K block, zero padding
    tk = 512                           # multiple of 256 -> matches 256-wide MXU
    return tk, _round_up(z_dim, tk)


def prepare_basic_decoder_params(weight, bias, *, stream_dtype=jnp.bfloat16):
    """One-time parameter preparation (call at setup, NOT per forward call).

    weight: (z_dim, FT) f32, bias: (FT,) f32 -> (w_prepared, b_prepared).
    The persistent bf16 weight halves streamed HBM bytes for this
    weight-streaming GEMM without any per-call cast/pad copy.
    """
    z_dim, ft = weight.shape
    _, zp = _plan_reduction(z_dim)
    w = weight.astype(stream_dtype)
    if zp != z_dim:                              # only when z_dim > _TK_CAP
        w = jnp.pad(w, ((0, zp - z_dim), (0, 0)))
    b = bias.astype(jnp.float32).reshape(1, ft)
    return w, b


def _decoder_kernel(x_ref, w_ref, b_ref, o_ref):
    # x: (tb, tk) stream-dtype   w: (tk, tn) stream-dtype
    # b: (1, tn)  f32            o: (tb, tn) f32  == the accumulator
    @pl.when(pl.program_id(2) == 0)
    def _init():
        # Seed the resident output block with the bias (broadcast over rows).
        o_ref[...] = jnp.broadcast_to(b_ref[...], o_ref.shape)

    o_ref[...] += jnp.dot(x_ref[...], w_ref[...],
                          preferred_element_type=jnp.float32)


def basic_decoder_forward(x, w_prepared, b_prepared,
                          num_frequency_bins, num_timesteps):
    """x: (B, z_dim) -> (B, num_frequency_bins, num_timesteps) f32."""
    batch, z_dim = x.shape
    ft = num_frequency_bins * num_timesteps
    tk, zp = _plan_reduction(z_dim)
    assert w_prepared.shape == (zp, ft), (w_prepared.shape, (zp, ft))
    assert b_prepared.shape == (1, ft)

    stream_dtype = w_prepared.dtype
    sbytes = jnp.dtype(stream_dtype).itemsize
    obytes = 4                                     # f32 output / accumulator

    # Batch tile: cover the whole padded batch when it fits so W streams once.
    tb = min(_round_up(batch, 8), _TB_CAP)
    bp = _round_up(batch, tb)

    # FT tile width from the per-generation VMEM budget (70% of physical).
    vmem_budget = int(_vmem_capacity_bytes() * 0.7)
    fixed = 2 * tb * tk * sbytes                       # x tile (double buffered)
    per_tn = (2 * tk * sbytes                          # W tile (double buffered)
              + 2 * tb * obytes                        # out tile (double buffered)
              + 2 * 4)                                 # bias tile
    tn_budget = max(128, ((vmem_budget - fixed) // per_tn // 128) * 128)
    n_ft = _cdiv(ft, tn_budget)
    if ft >= 256:
        n_ft = max(n_ft, 2)     # >= 2 FT tiles so v7x megacore shards along FT
    tn = min(tn_budget, _round_up(_cdiv(ft, n_ft), 128))

    # Pad / cast only the (small) activations; weights were prepared once.
    x_s = x.astype(stream_dtype)
    if bp != batch or zp != z_dim:
        x_s = jnp.pad(x_s, ((0, bp - batch), (0, zp - z_dim)))

    grid = (_cdiv(ft, tn), bp // tb, zp // tk)     # (FT tiles, B tiles, K last)

    out_flat = pl.pallas_call(
        _decoder_kernel,
        out_shape=jax.ShapeDtypeStruct((bp, ft), jnp.float32),
        grid_spec=pltpu.PrefetchScalarGridSpec(
            num_scalar_prefetch=0,
            grid=grid,
            in_specs=[
                pl.BlockSpec((tb, tk), lambda j, i, k: (i, k)),   # x row strip
                pl.BlockSpec((tk, tn), lambda j, i, k: (k, j)),   # W tile
                pl.BlockSpec((1, tn), lambda j, i, k: (0, j)),    # bias tile
            ],
            out_specs=pl.BlockSpec((tb, tn), lambda j, i, k: (i, j)),
        ),
        compiler_params=pltpu.CompilerParams(
            # FT axis "parallel" (disjoint W halves per TC on v7x); B and the
            # reduction axis "arbitrary" so megacore never shards along B
            # (which would double-stream W).
            dimension_semantics=("parallel", "arbitrary", "arbitrary"),
            vmem_limit_bytes=vmem_budget,
        ),
        cost_estimate=pl.CostEstimate(
            flops=2 * bp * zp * ft,
            transcendentals=0,
            bytes_accessed=(x_s.size * sbytes + w_prepared.size * sbytes
                            + b_prepared.size * 4 + bp * ft * obytes),
        ),
    )(x_s, w_prepared, b_prepared)

    return out_flat[:batch].reshape(batch, num_frequency_bins, num_timesteps)


if __name__ == "__main__":
    # Small shapes consistent with the documented forward contract.
    batch_size = 2
    z_dim = 32
    num_frequency_bins = 16
    num_timesteps = 8

    key = jax.random.PRNGKey(0)
    kx, kw, kb = jax.random.split(key, 3)

    x = jax.random.normal(kx, (batch_size, z_dim), dtype=jnp.float32)
    # Deterministic parameter init (synthetic; no checkpoint loading).
    weight = (jax.random.normal(kw, (z_dim, num_frequency_bins * num_timesteps),
                                dtype=jnp.float32)
              * (1.0 / jnp.sqrt(z_dim)))
    bias = jax.random.normal(kb, (num_frequency_bins * num_timesteps,),
                             dtype=jnp.float32) * 0.01

    # One-time parameter prep (persistent bf16 weight; no per-call cast/pad).
    w_prep, b_prep = prepare_basic_decoder_params(weight, bias)

    out = basic_decoder_forward(x, w_prep, b_prep,
                                num_frequency_bins, num_timesteps)
    out = jax.block_until_ready(out)

    # Reference check in plain JAX (f32). Kernel streams x / W in bf16
    # (MXU-native, halves HBM traffic) so tolerance is loosened accordingly.
    ref = (x @ weight + bias).reshape(batch_size, num_frequency_bins,
                                      num_timesteps)
    assert out.shape == (batch_size, num_frequency_bins, num_timesteps)
    assert jnp.allclose(out, ref, atol=3e-2, rtol=3e-2), (
        float(jnp.max(jnp.abs(out - ref))))

    print("KERNEL_OK")
</pallas_src>

<mosaic_0001>
module attributes {stable_mosaic.version = 11 : i64} {
  func.func @_decoder_kernel(%arg0: i32, %arg1: i32, %arg2: i32, %arg3: memref<8x32xbf16, #tpu.memory_space<vmem>>, %arg4: memref<32x128xbf16, #tpu.memory_space<vmem>>, %arg5: memref<1x128xf32, #tpu.memory_space<vmem>>, %arg6: memref<8x128xf32, #tpu.memory_space<vmem>>) attributes {dimension_semantics = [#tpu.dimension_semantics<parallel>, #tpu.dimension_semantics<arbitrary>, #tpu.dimension_semantics<arbitrary>], iteration_bounds = array<i64: 1, 1, 1>, scalar_prefetch = 0 : i64, scratch_operands = 0 : i64, tpu.core_type = #tpu.core_type<tc>, window_params = [{transform_indices = @transform_0, window_bounds = array<i64: 8, 32>}, {transform_indices = @transform_1, window_bounds = array<i64: 32, 128>}, {transform_indices = @transform_2, window_bounds = array<i64: 1, 128>}, {transform_indices = @transform_3, window_bounds = array<i64: 8, 128>}]} {
    %c0_i32 = arith.constant 0 : i32
    %0 = arith.cmpi eq, %arg2, %c0_i32 : i32
    %1 = arith.extui %0 : i1 to i32
    %c0_i32_0 = arith.constant 0 : i32
    %2 = arith.cmpi ne, %1, %c0_i32_0 : i32
    scf.if %2 {
      %c0_8 = arith.constant 0 : index
      %c0_9 = arith.constant 0 : index
      %9 = vector.load %arg5[%c0_8, %c0_9] : memref<1x128xf32, #tpu.memory_space<vmem>>, vector<1x128xf32>
      %10 = vector.shape_cast %9 : vector<1x128xf32> to vector<1x128xf32>
      %11 = vector.broadcast %10 : vector<1x128xf32> to vector<8x128xf32>
      %c0_10 = arith.constant 0 : index
      %c0_11 = arith.constant 0 : index
      %12 = vector.load %arg6[%c0_10, %c0_11] : memref<8x128xf32, #tpu.memory_space<vmem>>, vector<8x128xf32>
      tpu.vector_store %arg6[%c0_10, %c0_11], %11 {strides = array<i32>} : memref<8x128xf32, #tpu.memory_space<vmem>>, vector<8x128xf32>,
    } else {
    }
    %c0 = arith.constant 0 : index
    %c0_1 = arith.constant 0 : index
    %3 = vector.load %arg6[%c0, %c0_1] : memref<8x128xf32, #tpu.memory_space<vmem>>, vector<8x128xf32>
    %c0_2 = arith.constant 0 : index
    %c0_3 = arith.constant 0 : index
    %4 = vector.load %arg3[%c0_2, %c0_3] : memref<8x32xbf16, #tpu.memory_space<vmem>>, vector<8x32xbf16>
    %c0_4 = arith.constant 0 : index
    %c0_5 = arith.constant 0 : index
    %5 = vector.load %arg4[%c0_4, %c0_5] : memref<32x128xbf16, #tpu.memory_space<vmem>>, vector<32x128xbf16>
    %cst = arith.constant dense<0.000000e+00> : vector<8x128xf32>
    %6 = tpu.matmul %4, %5, %cst {dimension_numbers = #tpu.dot_dimension_numbers<[1], [0], [0], [1], [0, 0, 1, 1], [], []>} : vector<8x32xbf16>, vector<32x128xbf16>, vector<8x128xf32> -> vector<8x128xf32>
    %7 = arith.addf %3, %6 : vector<8x128xf32>
    %c0_6 = arith.constant 0 : index
    %c0_7 = arith.constant 0 : index
    %8 = vector.load %arg6[%c0_6, %c0_7] : memref<8x128xf32, #tpu.memory_space<vmem>>, vector<8x128xf32>
    tpu.vector_store %arg6[%c0_6, %c0_7], %7 {strides = array<i32>} : memref<8x128xf32, #tpu.memory_space<vmem>>, vector<8x128xf32>,
    return
  }
  func.func @transform_0(%arg0: i32, %arg1: i32, %arg2: i32) -> (i32, i32) {
    %c0_i32 = arith.constant 0 : i32
    return %arg1, %arg2 : i32, i32
  }
  func.func @transform_1(%arg0: i32, %arg1: i32, %arg2: i32) -> (i32, i32) {
    %c0_i32 = arith.constant 0 : i32
    return %arg2, %arg0 : i32, i32
  }
  func.func @transform_2(%arg0: i32, %arg1: i32, %arg2: i32) -> (i32, i32) {
    %c0_i32 = arith.constant 0 : i32
    %c0_i32_0 = arith.constant 0 : i32
    return %c0_i32, %arg0 : i32, i32
  }
  func.func @transform_3(%arg0: i32, %arg1: i32, %arg2: i32) -> (i32, i32) {
    %c0_i32 = arith.constant 0 : i32
    return %arg1, %arg0 : i32, i32
  }
}

</mosaic_0001>

<llo_original>
// kernel: tpu_custom_call.1
$region0: #{tpu_custom_call.1}
  #allocation0 [shape = 'u32[]', space=smem, size = 0x4, offset = 0x4, fixed_abs, tag = 'smem constant byte address 0x4 - core index']
  #allocation1 [shape = 'u32[144,128]{1,0:T(1,128)}', space=vmem, size = 0x12000, scoped, tag = 'internal scratch']
  %s0 = inlined_call_operand.hbm [shape: bf16[8,32], index: 0, kind: input, shape index: {}]
  %s1 = inlined_call_operand.hbm [shape: bf16[32,128], index: 1, kind: input, shape index: {}]
  %s2 = inlined_call_operand.vmem [shape: f32[1,128], index: 2, kind: input, shape index: {}]
  %s3 = inlined_call_operand.hbm [shape: f32[8,128], index: 3, kind: output, shape index: {}]
  %s4 = sld [smem:[#allocation0]]
  $region34: #{tpu_custom_call.1} parent=0
    _
  %s6 = ssub.s32 1, %s4
  %s7 = scalar_select 0, %s6, %s4
  $region1: #{tpu_custom_call.1} parent=0
    #allocation2 [shape = 'u8[2048]{0}', space=vmem, size = 0x800, scoped, tag = 'input window, operand 0, single buffered']
    #allocation3 [shape = 's32[1]{0}', space=sflag, size = 0x4, scoped, tag = 'scoped memory for tpu_custom_call.1']
    #allocation4 [shape = 's32[1]{0}', space=sflag, size = 0x4, scoped, tag = 'scoped memory for tpu_custom_call.1']
    #allocation5 [shape = 'u8[8192]{0}', space=vmem, size = 0x2000, scoped, tag = 'input window, operand 1, single buffered']
    #allocation6 [shape = 's32[1]{0}', space=sflag, size = 0x4, scoped, tag = 'scoped memory for tpu_custom_call.1']
    #allocation7 [shape = 'u8[4096]{0}', space=vmem, size = 0x1000, scoped, tag = 'output window, operand 0, single buffered']
    %8 = vsyncpa [#allocation3], 0
    %9 = vsyncpa [#allocation6], 0
    %10 = vsyncpa [#allocation4], 0
    // Predicated region
    $region2: #{tpu_custom_call.1} parent=1 // pred_check
      _
    $region3: #{tpu_custom_call.1} parent=1 // pred_check_branch
      %12 = sbr.rel (0) target = $region5
    $region4: #{tpu_custom_call.1} parent=1 // pred_region
      %s14 = ssub.s32 64, 64
      %15 = vsyncadd [#allocation3], %s14
      %s17 = sshll.u32 [#allocation2], 4
      %s18 = int_to_ptr.vmem [resolvable:$true] %s17
      %20 = dma.hbm_to_vmem [thread:$0]  %s0, 64, %s18, [#allocation3]
    $region5: #{tpu_custom_call.1} parent=1 // pred_fallthru
      _
    // Predicated region
    $region6: #{tpu_custom_call.1} parent=1 // pred_check
      _
    $region7: #{tpu_custom_call.1} parent=1 // pred_check_branch
      %22 = sbr.rel (0) target = $region9
    $region8: #{tpu_custom_call.1} parent=1 // pred_region
      %s24 = ssub.s32 256, 256
      %25 = vsyncadd [#allocation6], %s24
      %s26 = sshll.u32 [#allocation5], 4
      %s27 = int_to_ptr.vmem [resolvable:$true] %s26
      %32 = dma.hbm_to_vmem [thread:$0]  %s1, 256, %s27, [#allocation6], 64, 64, 4
    $region9: #{tpu_custom_call.1} parent=1 // pred_fallthru
      _
    // Predicated region
    $region10: #{tpu_custom_call.1} parent=1 // pred_check
      _
    $region11: #{tpu_custom_call.1} parent=1 // pred_check_branch
      %34 = sbr.rel (0) target = $region13
    $region12: #{tpu_custom_call.1} parent=1 // pred_region
      _
    $region13: #{tpu_custom_call.1} parent=1 // pred_fallthru
      _
    // Predicated region
    $region14: #{tpu_custom_call.1} parent=1 // pred_check
      _
    $region15: #{tpu_custom_call.1} parent=1 // pred_check_branch
      %36 = sbr.rel (0) target = $region17
    $region16: #{tpu_custom_call.1} parent=1 // pred_region
      %37 = dma.done [#allocation3], 64
    $region17: #{tpu_custom_call.1} parent=1 // pred_fallthru
      _
    // Predicated region
    $region18: #{tpu_custom_call.1} parent=1 // pred_check
      _
    $region19: #{tpu_custom_call.1} parent=1 // pred_check_branch
      %39 = sbr.rel (0) target = $region21
    $region20: #{tpu_custom_call.1} parent=1 // pred_region
      %40 = dma.done [#allocation6], 256
    $region21: #{tpu_custom_call.1} parent=1 // pred_fallthru
      _
    %p42 = scmp.eq.s32.totalorder 0, 0
    // Predicated region
    $region22: #{tpu_custom_call.1} parent=1 // pred_check
      %p43 = pneg %p42
    $region23: #{tpu_custom_call.1} parent=1 // pred_check_branch
      %45 = sbr.rel (%p43) target = $region25
    $region24: #{tpu_custom_call.1} parent=1 // pred_region
      %v46 = vld [vmem:[%s2] sm:$0x1]
      %v48 = vlaneseq
      %v49 = vshrl.u32 %v48, 7
      %v50 = vsub.s32 0, %v49
      %v51 = vrot.slane %v46, %v50
      %53 = vst [vmem:[#allocation7] sm:$0xff] %v51
    $region25: #{tpu_custom_call.1} parent=1 // pred_fallthru
      _
    %v54 = vld [vmem:[#allocation7] sm:$0xff]
    %v55 = vld [vmem:[#allocation2] sm:$0xf]
    %v56 = vld [vmem:[#allocation5] sm:$0xf]
    %v57 = vld [vmem:[#allocation5 + $0x4] sm:$0xf]
    %v58 = vld [vmem:[#allocation5 + $0x8] sm:$0xf]
    %v59 = vld [vmem:[#allocation5 + $0xc] sm:$0xf]
    %v64 = vunpack.c.l.b16 %v56
    %v65 = vunpack.c.l.b16 %v57
    %v66 = vunpack.c.l.b16 %v58
    %v67 = vunpack.c.l.b16 %v59
    %v68 = vpack.c.b16 %v65, %v64
    %v69 = vpack.c.b16 %v67, %v66
    %vm72 = vcmask 261120
    %v74 = vsel %vm72, %v55, 0
    %76 = vmatprep.subr.bf16.mxu0 0
    %77 = vmatpush1.bf16.msra.mxu0 %v68
    %78 = vmatprep.subr.bf16.mxu0 0
    %79 = vmatpush1.bf16.msra.mxu0 %v69
    %80 = vmatprep.subr.bf16.mxu0 0
    %81 = vmatpush1.bf16.msra.mxu0 0
    %82 = vmatprep.subr.bf16.mxu0 0
    %83 = vmatpush1.bf16.msra.mxu0 0
    %84 = vmatprep.subr.bf16.mxu0 0
    %85 = vmatpush1.bf16.msra.mxu0 0
    %86 = vmatprep.subr.bf16.mxu0 0
    %87 = vmatpush1.bf16.msra.mxu0 0
    %88 = vmatprep.subr.bf16.mxu0 0
    %89 = vmatpush1.bf16.msra.mxu0 0
    %90 = vmatprep.subr.bf16.mxu0 0
    %91 = vmatpush1.bf16.msra.mxu0 0
    %92 = vmatprep.subr.bf16.mxu0 0
    %93 = vmatpush1.bf16.msra.mxu0 0
    %94 = vmatprep.subr.bf16.mxu0 0
    %95 = vmatpush1.bf16.msra.mxu0 0
    %96 = vmatprep.subr.bf16.mxu0 0
    %97 = vmatpush1.bf16.msra.mxu0 0
    %98 = vmatprep.subr.bf16.mxu0 0
    %99 = vmatpush1.bf16.msra.mxu0 0
    %100 = vmatprep.subr.bf16.mxu0 0
    %101 = vmatpush1.bf16.msra.mxu0 0
    %102 = vmatprep.subr.bf16.mxu0 0
    %103 = vmatpush1.bf16.msra.mxu0 0
    %104 = vmatprep.subr.bf16.mxu0 0
    %105 = vmatpush1.bf16.msra.mxu0 0
    %106 = vmatprep.subr.bf16.mxu0 0
    %107 = vmatpush1.bf16.msra.mxu0 0
    %108 = vmatprep.mubr.bf16.mxu0 0
    %109 = vmatmul.mubr.bf16.gmra.mrb[0].mxu0 %v74
    %v110 = vpop.f32.mrb[0].mxu0
    %v111 = vadd.f32 0.0, %v110
    %v112 = vpop.f32.mrb[0].mxu0
    %v113 = vpop.f32.mrb[0].mxu0
    %v114 = vpop.f32.mrb[0].mxu0
    %115 = vdwg.mxu0
    %v116 = vadd.f32 %v54, %v111
    %117 = vst [vmem:[#allocation7] sm:$0xff] %v116
    // Predicated region
    $region26: #{tpu_custom_call.1} parent=1 // pred_check
      _
    $region27: #{tpu_custom_call.1} parent=1 // pred_check_branch
      %119 = sbr.rel (0) target = $region29
    $region28: #{tpu_custom_call.1} parent=1 // pred_region
      %s121 = ssub.s32 128, 128
      %122 = vsyncadd [#allocation4], %s121
      %s124 = sshll.u32 [#allocation7], 4
      %s125 = int_to_ptr.vmem [resolvable:$true] %s124
      %127 = dma.vmem_to_hbm [thread:$0]  %s125, 128, %s3, [#allocation4]
    $region29: #{tpu_custom_call.1} parent=1 // pred_fallthru
      _
    // Predicated region
    $region30: #{tpu_custom_call.1} parent=1 // pred_check
      _
    $region31: #{tpu_custom_call.1} parent=1 // pred_check_branch
      %129 = sbr.rel (0) target = $region33
    $region32: #{tpu_custom_call.1} parent=1 // pred_region
      %130 = dma.done [#allocation4], 128
    $region33: #{tpu_custom_call.1} parent=1 // pred_fallthru
      _
    %131 = vsyncpa [#allocation3], 1
    %132 = vsyncpa [#allocation6], 1
    %133 = vsyncpa [#allocation4], 1

</llo_original>
